<compile_context>
chip_gen: v7x
topology: tpu7x:2x2x1
jax: 0.10.0
libtpu: 0.0.40
codegen_flags: <defaults>
</compile_context>

<pallas_src>
import functools

import jax
import jax.numpy as jnp
from jax.experimental import pallas as pl
from jax.experimental.pallas import tpu as pltpu

LANE = 128


def _round_up(x, m):
    return (x + m - 1) // m * m


def _dqn_kernel(x_ref, w1_ref, b1_ref, w2_ref, b2_ref, w3_ref, b3_ref,
                wo_ref, bo_ref, out_ref):
    """One batch tile of the full DQN forward (all six matmuls fused)."""
    # Cast the f32 state tile to bf16 in-kernel (no separate XLA cast pass).
    x = x_ref[...].astype(jnp.bfloat16)

    # Hoist the reused weights / biases: fc2 and fc3 are each applied twice.
    w2 = w2_ref[...]
    b2 = b2_ref[...]
    w3 = w3_ref[...]
    b3 = b3_ref[...]

    # fc1 + relu
    h = jnp.dot(x, w1_ref[...], preferred_element_type=jnp.float32) + b1_ref[...]
    h = jnp.maximum(h, 0.0).astype(jnp.bfloat16)

    # fc2 + relu (applied twice, exactly as the PyTorch forward does)
    h = jnp.dot(h, w2, preferred_element_type=jnp.float32) + b2
    h = jnp.maximum(h, 0.0).astype(jnp.bfloat16)
    h = jnp.dot(h, w2, preferred_element_type=jnp.float32) + b2
    h = jnp.maximum(h, 0.0).astype(jnp.bfloat16)

    # fc3 + relu (applied twice)
    h = jnp.dot(h, w3, preferred_element_type=jnp.float32) + b3
    h = jnp.maximum(h, 0.0).astype(jnp.bfloat16)
    h = jnp.dot(h, w3, preferred_element_type=jnp.float32) + b3
    h = jnp.maximum(h, 0.0).astype(jnp.bfloat16)

    # output head (no activation); lane-dense padded to a multiple of 128 cols
    out_ref[...] = (jnp.dot(h, wo_ref[...], preferred_element_type=jnp.float32)
                    + bo_ref[...]).astype(out_ref.dtype)


def prepare_params(params):
    """One-time, outside-the-hot-path preparation of the parameters:
    cast weights to bf16 (native MXU dtype) and zero-pad the output head up to
    a multiple of 128 lanes so the kernel's store is a full unmasked vst."""
    action_size = params["wo"].shape[1]
    n_out = _round_up(action_size, LANE)
    wo = params["wo"].astype(jnp.bfloat16)
    bo = params["bo"].astype(jnp.float32)
    if n_out != action_size:
        wo = jnp.pad(wo, ((0, 0), (0, n_out - action_size)))
        bo = jnp.pad(bo, ((0, 0), (0, n_out - action_size)))
    return {
        "w1": params["w1"].astype(jnp.bfloat16), "b1": params["b1"].astype(jnp.float32),
        "w2": params["w2"].astype(jnp.bfloat16), "b2": params["b2"].astype(jnp.float32),
        "w3": params["w3"].astype(jnp.bfloat16), "b3": params["b3"].astype(jnp.float32),
        "wo": wo, "bo": bo,
    }


@functools.partial(jax.jit, static_argnames=("action_size", "tile_b", "out_dtype"))
def dqn_forward(state, prepared, *, action_size, tile_b=4096,
                out_dtype=jnp.bfloat16):
    """state: [batch, state_size] f32.  prepared: output of prepare_params."""
    batch, state_size = state.shape
    hidden = prepared["w1"].shape[1]
    n_out = prepared["wo"].shape[1]          # lane-padded multiple of 128

    # --- batch tile selection (no full-array padding of the input) ---
    tb = min(tile_b, batch)
    if batch > 8:
        # Keep at least 2 grid steps so v7x's two TensorCores both get work
        # (the "parallel" axis is how work is sharded across them).
        tb = min(tb, _round_up(pl.cdiv(batch, 2), 8))
    if tb < batch:
        tb = _round_up(tb, 8)                # sublane-aligned tiles when tiling
    grid = (pl.cdiv(batch, tb),)             # ragged last tile handled by Pallas

    def resident(shape):
        # Full-array block, same block every grid step -> stays in VMEM.
        return pl.BlockSpec(shape, lambda i: (0, 0))

    out = pl.pallas_call(
        _dqn_kernel,
        out_shape=jax.ShapeDtypeStruct((batch, n_out), out_dtype),
        grid=grid,
        in_specs=[
            pl.BlockSpec((tb, state_size), lambda i: (i, 0)),        # state tile (f32)
            resident((state_size, hidden)), resident((1, hidden)),   # fc1
            resident((hidden, hidden)),     resident((1, hidden)),   # fc2
            resident((hidden, hidden)),     resident((1, hidden)),   # fc3
            resident((hidden, n_out)),      resident((1, n_out)),    # out (padded)
        ],
        out_specs=pl.BlockSpec((tb, n_out), lambda i: (i, 0)),
        compiler_params=pltpu.CompilerParams(
            dimension_semantics=("parallel",),
            vmem_limit_bytes=32 * 1024 * 1024),
    )(state, prepared["w1"], prepared["b1"], prepared["w2"], prepared["b2"],
      prepared["w3"], prepared["b3"], prepared["wo"], prepared["bo"])

    return out[:, :action_size]


def init_params(key, state_size, action_size, hidden):
    """PyTorch-Linear-style init: U(-1/sqrt(fan_in), 1/sqrt(fan_in)).

    Weights are stored transposed, i.e. shape (in_features, out_features),
    so the kernel computes x @ W directly (equivalent to x @ W_pt.T).
    """
    def linear(k, fan_in, fan_out):
        kw, kb = jax.random.split(k)
        bound = 1.0 / jnp.sqrt(jnp.float32(fan_in))
        w = jax.random.uniform(kw, (fan_in, fan_out), jnp.float32, -bound, bound)
        b = jax.random.uniform(kb, (1, fan_out), jnp.float32, -bound, bound)
        return w, b

    k1, k2, k3, k4, ko = jax.random.split(key, 5)
    w1, b1 = linear(k1, state_size, hidden)   # fc1
    w2, b2 = linear(k2, hidden, hidden)       # fc2  (applied twice in forward)
    w3, b3 = linear(k3, hidden, hidden)       # fc3  (applied twice in forward)
    _w4, _b4 = linear(k4, hidden, hidden)     # fc4 exists in __init__ but unused in forward
    wo, bo = linear(ko, hidden, action_size)  # out
    return {"w1": w1, "b1": b1, "w2": w2, "b2": b2,
            "w3": w3, "b3": b3, "wo": wo, "bo": bo}


def dqn_reference(state, params):
    """Pure-JAX reference mirroring the kernel's bf16-input / f32-accumulate math.

    NOTE: intermediates are round-tripped through bf16 between layers, so this
    is not bit-identical to a pure-f32 PyTorch forward (fine for inference /
    action selection; keep the f32 out_dtype for training-side loss math)."""
    x = state.astype(jnp.bfloat16)
    w1 = params["w1"].astype(jnp.bfloat16)
    w2 = params["w2"].astype(jnp.bfloat16)
    w3 = params["w3"].astype(jnp.bfloat16)
    wo = params["wo"].astype(jnp.bfloat16)

    h = jnp.maximum(jnp.dot(x, w1, preferred_element_type=jnp.float32)
                    + params["b1"], 0.0).astype(jnp.bfloat16)
    h = jnp.maximum(jnp.dot(h, w2, preferred_element_type=jnp.float32)
                    + params["b2"], 0.0).astype(jnp.bfloat16)
    h = jnp.maximum(jnp.dot(h, w2, preferred_element_type=jnp.float32)
                    + params["b2"], 0.0).astype(jnp.bfloat16)
    h = jnp.maximum(jnp.dot(h, w3, preferred_element_type=jnp.float32)
                    + params["b3"], 0.0).astype(jnp.bfloat16)
    h = jnp.maximum(jnp.dot(h, w3, preferred_element_type=jnp.float32)
                    + params["b3"], 0.0).astype(jnp.bfloat16)
    return jnp.dot(h, wo, preferred_element_type=jnp.float32) + params["bo"]


if __name__ == "__main__":
    batch = 2
    state_size = 8
    action_size = 4
    # input_layer_neurons == hidden_layer_neurons is required because the
    # forward applies fc2 (and fc3) to its own output; 128 matches the module
    # default hidden width and fills the MXU / vreg lanes.
    hidden = 128

    key = jax.random.PRNGKey(0)
    k_state, k_params = jax.random.split(key)

    state = jax.random.normal(k_state, (batch, state_size), jnp.float32)
    params = init_params(k_params, state_size, action_size, hidden)
    prepared = prepare_params(params)          # one-time prep outside hot path

    q_ref = dqn_reference(state, params)

    # Default path: bf16 output (inference / action-selection).
    q_bf16 = jax.block_until_ready(
        dqn_forward(state, prepared, action_size=action_size))
    assert q_bf16.shape == (batch, action_size), q_bf16.shape
    assert q_bf16.dtype == jnp.bfloat16, q_bf16.dtype
    assert jnp.allclose(q_bf16.astype(jnp.float32), q_ref, atol=2e-2, rtol=2e-2), \
        "bf16-output mismatch vs reference"

    # f32 output path (training-side loss math), tighter tolerance.
    q_f32 = jax.block_until_ready(
        dqn_forward(state, prepared, action_size=action_size,
                    out_dtype=jnp.float32))
    assert q_f32.shape == (batch, action_size), q_f32.shape
    assert q_f32.dtype == jnp.float32, q_f32.dtype
    assert jnp.allclose(q_f32, q_ref, atol=5e-3, rtol=5e-3), \
        "f32-output mismatch vs reference"

    print("KERNEL_OK")
</pallas_src>

<mosaic_0001>
module attributes {stable_mosaic.version = 11 : i64} {
  func.func @_dqn_kernel(%arg0: i32, %arg1: memref<2x8xf32, #tpu.memory_space<vmem>>, %arg2: memref<8x128xbf16, #tpu.memory_space<vmem>>, %arg3: memref<1x128xf32, #tpu.memory_space<vmem>>, %arg4: memref<128x128xbf16, #tpu.memory_space<vmem>>, %arg5: memref<1x128xf32, #tpu.memory_space<vmem>>, %arg6: memref<128x128xbf16, #tpu.memory_space<vmem>>, %arg7: memref<1x128xf32, #tpu.memory_space<vmem>>, %arg8: memref<128x128xbf16, #tpu.memory_space<vmem>>, %arg9: memref<1x128xf32, #tpu.memory_space<vmem>>, %arg10: memref<2x128xbf16, #tpu.memory_space<vmem>>) attributes {dimension_semantics = [#tpu.dimension_semantics<parallel>], iteration_bounds = array<i64: 1>, scalar_prefetch = 0 : i64, scratch_operands = 0 : i64, tpu.core_type = #tpu.core_type<tc>, window_params = [{transform_indices = @transform_0, window_bounds = array<i64: 2, 8>}, {pipeline_mode = #tpu.pipeline_mode<synchronous>, transform_indices = @transform_1, window_bounds = array<i64: 8, 128>}, {pipeline_mode = #tpu.pipeline_mode<synchronous>, transform_indices = @transform_2, window_bounds = array<i64: 1, 128>}, {pipeline_mode = #tpu.pipeline_mode<synchronous>, transform_indices = @transform_3, window_bounds = array<i64: 128, 128>}, {pipeline_mode = #tpu.pipeline_mode<synchronous>, transform_indices = @transform_4, window_bounds = array<i64: 1, 128>}, {pipeline_mode = #tpu.pipeline_mode<synchronous>, transform_indices = @transform_5, window_bounds = array<i64: 128, 128>}, {pipeline_mode = #tpu.pipeline_mode<synchronous>, transform_indices = @transform_6, window_bounds = array<i64: 1, 128>}, {pipeline_mode = #tpu.pipeline_mode<synchronous>, transform_indices = @transform_7, window_bounds = array<i64: 128, 128>}, {pipeline_mode = #tpu.pipeline_mode<synchronous>, transform_indices = @transform_8, window_bounds = array<i64: 1, 128>}, {transform_indices = @transform_9, window_bounds = array<i64: 2, 128>}]} {
    %c0 = arith.constant 0 : index
    %c0_0 = arith.constant 0 : index
    %0 = vector.load %arg1[%c0, %c0_0] : memref<2x8xf32, #tpu.memory_space<vmem>>, vector<2x8xf32>
    %1 = arith.truncf %0 : vector<2x8xf32> to vector<2x8xbf16>
    %c0_1 = arith.constant 0 : index
    %c0_2 = arith.constant 0 : index
    %2 = vector.load %arg4[%c0_1, %c0_2] : memref<128x128xbf16, #tpu.memory_space<vmem>>, vector<128x128xbf16>
    %c0_3 = arith.constant 0 : index
    %c0_4 = arith.constant 0 : index
    %3 = vector.load %arg5[%c0_3, %c0_4] : memref<1x128xf32, #tpu.memory_space<vmem>>, vector<1x128xf32>
    %c0_5 = arith.constant 0 : index
    %c0_6 = arith.constant 0 : index
    %4 = vector.load %arg6[%c0_5, %c0_6] : memref<128x128xbf16, #tpu.memory_space<vmem>>, vector<128x128xbf16>
    %c0_7 = arith.constant 0 : index
    %c0_8 = arith.constant 0 : index
    %5 = vector.load %arg7[%c0_7, %c0_8] : memref<1x128xf32, #tpu.memory_space<vmem>>, vector<1x128xf32>
    %c0_9 = arith.constant 0 : index
    %c0_10 = arith.constant 0 : index
    %6 = vector.load %arg2[%c0_9, %c0_10] : memref<8x128xbf16, #tpu.memory_space<vmem>>, vector<8x128xbf16>
    %cst = arith.constant dense<0.000000e+00> : vector<2x128xf32>
    %7 = tpu.matmul %1, %6, %cst {dimension_numbers = #tpu.dot_dimension_numbers<[1], [0], [0], [1], [0, 0, 1, 1], [], []>} : vector<2x8xbf16>, vector<8x128xbf16>, vector<2x128xf32> -> vector<2x128xf32>
    %c0_11 = arith.constant 0 : index
    %c0_12 = arith.constant 0 : index
    %8 = vector.load %arg3[%c0_11, %c0_12] : memref<1x128xf32, #tpu.memory_space<vmem>>, vector<1x128xf32>
    %9 = vector.broadcast %8 : vector<1x128xf32> to vector<2x128xf32>
    %10 = arith.addf %7, %9 : vector<2x128xf32>
    %cst_13 = arith.constant 0.000000e+00 : f32
    %11 = vector.broadcast %cst_13 : f32 to vector<2x128xf32>
    %12 = arith.maximumf %10, %11 : vector<2x128xf32>
    %13 = arith.truncf %12 : vector<2x128xf32> to vector<2x128xbf16>
    %cst_14 = arith.constant dense<0.000000e+00> : vector<2x128xf32>
    %14 = tpu.matmul %13, %2, %cst_14 {dimension_numbers = #tpu.dot_dimension_numbers<[1], [0], [0], [1], [0, 0, 1, 1], [], []>} : vector<2x128xbf16>, vector<128x128xbf16>, vector<2x128xf32> -> vector<2x128xf32>
    %15 = vector.broadcast %3 : vector<1x128xf32> to vector<2x128xf32>
    %16 = arith.addf %14, %15 : vector<2x128xf32>
    %cst_15 = arith.constant 0.000000e+00 : f32
    %17 = vector.broadcast %cst_15 : f32 to vector<2x128xf32>
    %18 = arith.maximumf %16, %17 : vector<2x128xf32>
    %19 = arith.truncf %18 : vector<2x128xf32> to vector<2x128xbf16>
    %cst_16 = arith.constant dense<0.000000e+00> : vector<2x128xf32>
    %20 = tpu.matmul %19, %2, %cst_16 {dimension_numbers = #tpu.dot_dimension_numbers<[1], [0], [0], [1], [0, 0, 1, 1], [], []>} : vector<2x128xbf16>, vector<128x128xbf16>, vector<2x128xf32> -> vector<2x128xf32>
    %21 = vector.broadcast %3 : vector<1x128xf32> to vector<2x128xf32>
    %22 = arith.addf %20, %21 : vector<2x128xf32>
    %cst_17 = arith.constant 0.000000e+00 : f32
    %23 = vector.broadcast %cst_17 : f32 to vector<2x128xf32>
    %24 = arith.maximumf %22, %23 : vector<2x128xf32>
    %25 = arith.truncf %24 : vector<2x128xf32> to vector<2x128xbf16>
    %cst_18 = arith.constant dense<0.000000e+00> : vector<2x128xf32>
    %26 = tpu.matmul %25, %4, %cst_18 {dimension_numbers = #tpu.dot_dimension_numbers<[1], [0], [0], [1], [0, 0, 1, 1], [], []>} : vector<2x128xbf16>, vector<128x128xbf16>, vector<2x128xf32> -> vector<2x128xf32>
    %27 = vector.broadcast %5 : vector<1x128xf32> to vector<2x128xf32>
    %28 = arith.addf %26, %27 : vector<2x128xf32>
    %cst_19 = arith.constant 0.000000e+00 : f32
    %29 = vector.broadcast %cst_19 : f32 to vector<2x128xf32>
    %30 = arith.maximumf %28, %29 : vector<2x128xf32>
    %31 = arith.truncf %30 : vector<2x128xf32> to vector<2x128xbf16>
    %cst_20 = arith.constant dense<0.000000e+00> : vector<2x128xf32>
    %32 = tpu.matmul %31, %4, %cst_20 {dimension_numbers = #tpu.dot_dimension_numbers<[1], [0], [0], [1], [0, 0, 1, 1], [], []>} : vector<2x128xbf16>, vector<128x128xbf16>, vector<2x128xf32> -> vector<2x128xf32>
    %33 = vector.broadcast %5 : vector<1x128xf32> to vector<2x128xf32>
    %34 = arith.addf %32, %33 : vector<2x128xf32>
    %cst_21 = arith.constant 0.000000e+00 : f32
    %35 = vector.broadcast %cst_21 : f32 to vector<2x128xf32>
    %36 = arith.maximumf %34, %35 : vector<2x128xf32>
    %37 = arith.truncf %36 : vector<2x128xf32> to vector<2x128xbf16>
    %c0_22 = arith.constant 0 : index
    %c0_23 = arith.constant 0 : index
    %38 = vector.load %arg8[%c0_22, %c0_23] : memref<128x128xbf16, #tpu.memory_space<vmem>>, vector<128x128xbf16>
    %cst_24 = arith.constant dense<0.000000e+00> : vector<2x128xf32>
    %39 = tpu.matmul %37, %38, %cst_24 {dimension_numbers = #tpu.dot_dimension_numbers<[1], [0], [0], [1], [0, 0, 1, 1], [], []>} : vector<2x128xbf16>, vector<128x128xbf16>, vector<2x128xf32> -> vector<2x128xf32>
    %c0_25 = arith.constant 0 : index
    %c0_26 = arith.constant 0 : index
    %40 = vector.load %arg9[%c0_25, %c0_26] : memref<1x128xf32, #tpu.memory_space<vmem>>, vector<1x128xf32>
    %41 = vector.broadcast %40 : vector<1x128xf32> to vector<2x128xf32>
    %42 = arith.addf %39, %41 : vector<2x128xf32>
    %43 = arith.truncf %42 : vector<2x128xf32> to vector<2x128xbf16>
    %c0_27 = arith.constant 0 : index
    %c0_28 = arith.constant 0 : index
    %44 = vector.load %arg10[%c0_27, %c0_28] : memref<2x128xbf16, #tpu.memory_space<vmem>>, vector<2x128xbf16>
    tpu.vector_store %arg10[%c0_27, %c0_28], %43 {strides = array<i32>} : memref<2x128xbf16, #tpu.memory_space<vmem>>, vector<2x128xbf16>,
    return
  }
  func.func @transform_0(%arg0: i32) -> (i32, i32) {
    %c0_i32 = arith.constant 0 : i32
    %c0_i32_0 = arith.constant 0 : i32
    return %arg0, %c0_i32 : i32, i32
  }
  func.func @transform_1(%arg0: i32) -> (i32, i32) {
    %c0_i32 = arith.constant 0 : i32
    %c0_i32_0 = arith.constant 0 : i32
    %c0_i32_1 = arith.constant 0 : i32
    return %c0_i32, %c0_i32_0 : i32, i32
  }
  func.func @transform_2(%arg0: i32) -> (i32, i32) {
    %c0_i32 = arith.constant 0 : i32
    %c0_i32_0 = arith.constant 0 : i32
    %c0_i32_1 = arith.constant 0 : i32
    return %c0_i32, %c0_i32_0 : i32, i32
  }
  func.func @transform_3(%arg0: i32) -> (i32, i32) {
    %c0_i32 = arith.constant 0 : i32
    %c0_i32_0 = arith.constant 0 : i32
    %c0_i32_1 = arith.constant 0 : i32
    return %c0_i32, %c0_i32_0 : i32, i32
  }
  func.func @transform_4(%arg0: i32) -> (i32, i32) {
    %c0_i32 = arith.constant 0 : i32
    %c0_i32_0 = arith.constant 0 : i32
    %c0_i32_1 = arith.constant 0 : i32
    return %c0_i32, %c0_i32_0 : i32, i32
  }
  func.func @transform_5(%arg0: i32) -> (i32, i32) {
    %c0_i32 = arith.constant 0 : i32
    %c0_i32_0 = arith.constant 0 : i32
    %c0_i32_1 = arith.constant 0 : i32
    return %c0_i32, %c0_i32_0 : i32, i32
  }
  func.func @transform_6(%arg0: i32) -> (i32, i32) {
    %c0_i32 = arith.constant 0 : i32
    %c0_i32_0 = arith.constant 0 : i32
    %c0_i32_1 = arith.constant 0 : i32
    return %c0_i32, %c0_i32_0 : i32, i32
  }
  func.func @transform_7(%arg0: i32) -> (i32, i32) {
    %c0_i32 = arith.constant 0 : i32
    %c0_i32_0 = arith.constant 0 : i32
    %c0_i32_1 = arith.constant 0 : i32
    return %c0_i32, %c0_i32_0 : i32, i32
  }
  func.func @transform_8(%arg0: i32) -> (i32, i32) {
    %c0_i32 = arith.constant 0 : i32
    %c0_i32_0 = arith.constant 0 : i32
    %c0_i32_1 = arith.constant 0 : i32
    return %c0_i32, %c0_i32_0 : i32, i32
  }
  func.func @transform_9(%arg0: i32) -> (i32, i32) {
    %c0_i32 = arith.constant 0 : i32
    %c0_i32_0 = arith.constant 0 : i32
    return %arg0, %c0_i32 : i32, i32
  }
}

</mosaic_0001>

<llo_original>
// kernel: dqn_forward.1
$region0: #{dqn_forward.1}
  #allocation0 [shape = 'u32[]', space=smem, size = 0x4, offset = 0x4, fixed_abs, tag = 'smem constant byte address 0x4 - core index']
  #allocation1 [shape = 'u32[144,128]{1,0:T(1,128)}', space=vmem, size = 0x12000, scoped, tag = 'internal scratch']
  %s0 = inlined_call_operand.hbm [shape: f32[2,8], index: 0, kind: input, shape index: {}]
  %s1 = inlined_call_operand.vmem [shape: bf16[8,128], index: 1, kind: input, shape index: {}]
  %s2 = inlined_call_operand.vmem [shape: f32[1,128], index: 2, kind: input, shape index: {}]
  %s3 = inlined_call_operand.hbm [shape: bf16[128,128], index: 3, kind: input, shape index: {}]
  %s4 = inlined_call_operand.vmem [shape: f32[1,128], index: 4, kind: input, shape index: {}]
  %s5 = inlined_call_operand.hbm [shape: bf16[128,128], index: 5, kind: input, shape index: {}]
  %s6 = inlined_call_operand.vmem [shape: f32[1,128], index: 6, kind: input, shape index: {}]
  %s7 = inlined_call_operand.hbm [shape: bf16[128,128], index: 7, kind: input, shape index: {}]
  %s8 = inlined_call_operand.vmem [shape: f32[1,128], index: 8, kind: input, shape index: {}]
  %s9 = inlined_call_operand.hbm [shape: bf16[2,128], index: 9, kind: output, shape index: {}]
  %s10 = sld [smem:[#allocation0]]
  $region62: #{dqn_forward.1} parent=0
    _
  %s12 = ssub.s32 1, %s10
  %s13 = scalar_select 0, %s12, %s10
  $region1: #{dqn_forward.1} parent=0
    #allocation2 [shape = 'u8[1024]{0}', space=vmem, size = 0x400, scoped, tag = 'input window, operand 0, single buffered']
    #allocation3 [shape = 's32[1]{0}', space=sflag, size = 0x4, scoped, tag = 'scoped memory for dqn_forward.1']
    #allocation4 [shape = 's32[1]{0}', space=sflag, size = 0x4, scoped, tag = 'scoped memory for dqn_forward.1']
    #allocation5 [shape = 'u8[32768]{0}', space=vmem, size = 0x8000, scoped, tag = 'input window, operand 3, single buffered']
    #allocation6 [shape = 's32[1]{0}', space=sflag, size = 0x4, scoped, tag = 'scoped memory for dqn_forward.1']
    #allocation7 [shape = 'u8[32768]{0}', space=vmem, size = 0x8000, scoped, tag = 'input window, operand 5, single buffered']
    #allocation8 [shape = 'u8[32768]{0}', space=vmem, size = 0x8000, scoped, tag = 'input window, operand 7, single buffered']
    #allocation9 [shape = 's32[1]{0}', space=sflag, size = 0x4, scoped, tag = 'scoped memory for dqn_forward.1']
    #allocation10 [shape = 'u8[512]{0}', space=vmem, size = 0x400, scoped, tag = 'output window, operand 0, single buffered']
    %14 = vsyncpa [#allocation3], 0
    %15 = vsyncpa [#allocation6], 0
    %16 = vsyncpa [#allocation9], 0
    %17 = vsyncpa [#allocation4], 0
    // Predicated region
    $region2: #{dqn_forward.1} parent=1 // pred_check
      _
    $region3: #{dqn_forward.1} parent=1 // pred_check_branch
      %19 = sbr.rel (0) target = $region5
    $region4: #{dqn_forward.1} parent=1 // pred_region
      %s21 = ssub.s32 32, 32
      %22 = vsyncadd [#allocation3], %s21
      %s24 = sshll.u32 [#allocation2], 4
      %s25 = int_to_ptr.vmem [resolvable:$true] %s24
      %27 = dma.hbm_to_vmem [thread:$0]  %s0, 32, %s25, [#allocation3]
    $region5: #{dqn_forward.1} parent=1 // pred_fallthru
      _
    // Predicated region
    $region6: #{dqn_forward.1} parent=1 // pred_check
      _
    $region7: #{dqn_forward.1} parent=1 // pred_check_branch
      %29 = sbr.rel (0) target = $region9
    $region8: #{dqn_forward.1} parent=1 // pred_region
      _
    $region9: #{dqn_forward.1} parent=1 // pred_fallthru
      _
    // Predicated region
    $region10: #{dqn_forward.1} parent=1 // pred_check
      _
    $region11: #{dqn_forward.1} parent=1 // pred_check_branch
      %31 = sbr.rel (0) target = $region13
    $region12: #{dqn_forward.1} parent=1 // pred_region
      _
    $region13: #{dqn_forward.1} parent=1 // pred_fallthru
      _
    // Predicated region
    $region14: #{dqn_forward.1} parent=1 // pred_check
      _
    $region15: #{dqn_forward.1} parent=1 // pred_check_branch
      %33 = sbr.rel (0) target = $region17
    $region16: #{dqn_forward.1} parent=1 // pred_region
      %s35 = ssub.s32 1024, 1024
      %36 = vsyncadd [#allocation6], %s35
      %s37 = sshll.u32 [#allocation5], 4
      %s38 = int_to_ptr.vmem [resolvable:$true] %s37
      %43 = dma.hbm_to_vmem [thread:$0]  %s3, 1024, %s38, [#allocation6], 64, 64, 4
    $region17: #{dqn_forward.1} parent=1 // pred_fallthru
      _
    // Predicated region
    $region18: #{dqn_forward.1} parent=1 // pred_check
      _
    $region19: #{dqn_forward.1} parent=1 // pred_check_branch
      %45 = sbr.rel (0) target = $region21
    $region20: #{dqn_forward.1} parent=1 // pred_region
      _
    $region21: #{dqn_forward.1} parent=1 // pred_fallthru
      _
    // Predicated region
    $region22: #{dqn_forward.1} parent=1 // pred_check
      _
    $region23: #{dqn_forward.1} parent=1 // pred_check_branch
      %47 = sbr.rel (0) target = $region25
    $region24: #{dqn_forward.1} parent=1 // pred_region
      %s49 = ssub.s32 1024, 1024
      %50 = vsyncadd [#allocation6], %s49
      %s51 = sshll.u32 [#allocation7], 4
      %s52 = int_to_ptr.vmem [resolvable:$true] %s51
      %57 = dma.hbm_to_vmem [thread:$0]  %s5, 1024, %s52, [#allocation6], 64, 64, 4
    $region25: #{dqn_forward.1} parent=1 // pred_fallthru
      _
    // Predicated region
    $region26: #{dqn_forward.1} parent=1 // pred_check
      _
    $region27: #{dqn_forward.1} parent=1 // pred_check_branch
      %59 = sbr.rel (0) target = $region29
    $region28: #{dqn_forward.1} parent=1 // pred_region
      _
    $region29: #{dqn_forward.1} parent=1 // pred_fallthru
      _
    // Predicated region
    $region30: #{dqn_forward.1} parent=1 // pred_check
      _
    $region31: #{dqn_forward.1} parent=1 // pred_check_branch
      %61 = sbr.rel (0) target = $region33
    $region32: #{dqn_forward.1} parent=1 // pred_region
      %s63 = ssub.s32 1024, 1024
      %64 = vsyncadd [#allocation9], %s63
      %s65 = sshll.u32 [#allocation8], 4
      %s66 = int_to_ptr.vmem [resolvable:$true] %s65
      %71 = dma.hbm_to_vmem [thread:$0]  %s7, 1024, %s66, [#allocation9], 64, 64, 4
    $region33: #{dqn_forward.1} parent=1 // pred_fallthru
      _
    // Predicated region
    $region34: #{dqn_forward.1} parent=1 // pred_check
      _
    $region35: #{dqn_forward.1} parent=1 // pred_check_branch
      %73 = sbr.rel (0) target = $region37
    $region36: #{dqn_forward.1} parent=1 // pred_region
      _
    $region37: #{dqn_forward.1} parent=1 // pred_fallthru
      _
    // Predicated region
    $region38: #{dqn_forward.1} parent=1 // pred_check
      _
    $region39: #{dqn_forward.1} parent=1 // pred_check_branch
      %75 = sbr.rel (0) target = $region41
    $region40: #{dqn_forward.1} parent=1 // pred_region
      %76 = dma.done [#allocation3], 32
    $region41: #{dqn_forward.1} parent=1 // pred_fallthru
      _
    // Predicated region
    $region42: #{dqn_forward.1} parent=1 // pred_check
      _
    $region43: #{dqn_forward.1} parent=1 // pred_check_branch
      %78 = sbr.rel (0) target = $region45
    $region44: #{dqn_forward.1} parent=1 // pred_region
      %79 = dma.done [#allocation6], 1024
    $region45: #{dqn_forward.1} parent=1 // pred_fallthru
      _
    // Predicated region
    $region46: #{dqn_forward.1} parent=1 // pred_check
      _
    $region47: #{dqn_forward.1} parent=1 // pred_check_branch
      %81 = sbr.rel (0) target = $region49
    $region48: #{dqn_forward.1} parent=1 // pred_region
      %82 = dma.done [#allocation6], 1024
    $region49: #{dqn_forward.1} parent=1 // pred_fallthru
      _
    // Predicated region
    $region50: #{dqn_forward.1} parent=1 // pred_check
      _
    $region51: #{dqn_forward.1} parent=1 // pred_check_branch
      %84 = sbr.rel (0) target = $region53
    $region52: #{dqn_forward.1} parent=1 // pred_region
      %85 = dma.done [#allocation9], 1024
    $region53: #{dqn_forward.1} parent=1 // pred_fallthru
      _
    %v87 = vld [vmem:[#allocation2] sm:$0x3]
    %v88 = vpack.c.bf16 %v87, %v87
    %v89 = vld [vmem:[#allocation5] sm:$0xf]
    %v90 = vld [vmem:[#allocation5 + $0x4] sm:$0xf]
    %v91 = vld [vmem:[#allocation5 + $0x8] sm:$0xf]
    %v92 = vld [vmem:[#allocation5 + $0xc] sm:$0xf]
    %v93 = vld [vmem:[#allocation5 + $0x10] sm:$0xf]
    %v94 = vld [vmem:[#allocation5 + $0x14] sm:$0xf]
    %v95 = vld [vmem:[#allocation5 + $0x18] sm:$0xf]
    %v96 = vld [vmem:[#allocation5 + $0x1c] sm:$0xf]
    %v97 = vld [vmem:[#allocation5 + $0x20] sm:$0xf]
    %v98 = vld [vmem:[#allocation5 + $0x24] sm:$0xf]
    %v99 = vld [vmem:[#allocation5 + $0x28] sm:$0xf]
    %v100 = vld [vmem:[#allocation5 + $0x2c] sm:$0xf]
    %v101 = vld [vmem:[#allocation5 + $0x30] sm:$0xf]
    %v102 = vld [vmem:[#allocation5 + $0x34] sm:$0xf]
    %v103 = vld [vmem:[#allocation5 + $0x38] sm:$0xf]
    %v104 = vld [vmem:[#allocation5 + $0x3c] sm:$0xf]
    %v105 = vld [vmem:[%s4] sm:$0x1]
    %v106 = vld [vmem:[#allocation7] sm:$0xf]
    %v107 = vld [vmem:[#allocation7 + $0x4] sm:$0xf]
    %v108 = vld [vmem:[#allocation7 + $0x8] sm:$0xf]
    %v109 = vld [vmem:[#allocation7 + $0xc] sm:$0xf]
    %v110 = vld [vmem:[#allocation7 + $0x10] sm:$0xf]
    %v111 = vld [vmem:[#allocation7 + $0x14] sm:$0xf]
    %v112 = vld [vmem:[#allocation7 + $0x18] sm:$0xf]
    %v113 = vld [vmem:[#allocation7 + $0x1c] sm:$0xf]
    %v114 = vld [vmem:[#allocation7 + $0x20] sm:$0xf]
    %v115 = vld [vmem:[#allocation7 + $0x24] sm:$0xf]
    %v116 = vld [vmem:[#allocation7 + $0x28] sm:$0xf]
    %v117 = vld [vmem:[#allocation7 + $0x2c] sm:$0xf]
    %v118 = vld [vmem:[#allocation7 + $0x30] sm:$0xf]
    %v119 = vld [vmem:[#allocation7 + $0x34] sm:$0xf]
    %v120 = vld [vmem:[#allocation7 + $0x38] sm:$0xf]
    %v121 = vld [vmem:[#allocation7 + $0x3c] sm:$0xf]
    %v122 = vld [vmem:[%s6] sm:$0x1]
    %v123 = vld [vmem:[%s1] sm:$0xf]
    %v124 = vld [vmem:[%s2] sm:$0x1]
    %v126 = vlaneseq
    %v127 = vshrl.u32 %v126, 7
    %v128 = vsub.s32 0, %v127
    %v129 = vrot.slane %v124, %v128
    %vm131 = vcmask 64512
    %v133 = vsel %vm131, %v88, 0
    %vm135 = vcmask 1043456
    %v137 = vsel %vm135, %v123, 0
    %139 = vmatprep.subr.bf16.mxu0 0
    %140 = vmatpush1.bf16.msra.mxu0 %v137
    %141 = vmatprep.subr.bf16.mxu0 0
    %142 = vmatpush1.bf16.msra.mxu0 0
    %143 = vmatprep.subr.bf16.mxu0 0
    %144 = vmatpush1.bf16.msra.mxu0 0
    %145 = vmatprep.subr.bf16.mxu0 0
    %146 = vmatpush1.bf16.msra.mxu0 0
    %147 = vmatprep.subr.bf16.mxu0 0
    %148 = vmatpush1.bf16.msra.mxu0 0
    %149 = vmatprep.subr.bf16.mxu0 0
    %150 = vmatpush1.bf16.msra.mxu0 0
    %151 = vmatprep.subr.bf16.mxu0 0
    %152 = vmatpush1.bf16.msra.mxu0 0
    %153 = vmatprep.subr.bf16.mxu0 0
    %154 = vmatpush1.bf16.msra.mxu0 0
    %155 = vmatprep.subr.bf16.mxu0 0
    %156 = vmatpush1.bf16.msra.mxu0 0
    %157 = vmatprep.subr.bf16.mxu0 0
    %158 = vmatpush1.bf16.msra.mxu0 0
    %159 = vmatprep.subr.bf16.mxu0 0
    %160 = vmatpush1.bf16.msra.mxu0 0
    %161 = vmatprep.subr.bf16.mxu0 0
    %162 = vmatpush1.bf16.msra.mxu0 0
    %163 = vmatprep.subr.bf16.mxu0 0
    %164 = vmatpush1.bf16.msra.mxu0 0
    %165 = vmatprep.subr.bf16.mxu0 0
    %166 = vmatpush1.bf16.msra.mxu0 0
    %167 = vmatprep.subr.bf16.mxu0 0
    %168 = vmatpush1.bf16.msra.mxu0 0
    %169 = vmatprep.subr.bf16.mxu0 0
    %170 = vmatpush1.bf16.msra.mxu0 0
    %171 = vmatprep.mubr.bf16.mxu0 0
    %172 = vmatmul.mubr.bf16.gmra.mrb[0].mxu0 %v133
    %v173 = vpop.f32.mrb[0].mxu0
    %v174 = vadd.f32 %v129, %v173
    %v175 = vpop.f32.mrb[0].mxu0
    %v176 = vpop.f32.mrb[0].mxu0
    %v177 = vpop.f32.mrb[0].mxu0
    %178 = vdwg.mxu0
    %v179 = vmax.f32 %v174, 0.0
    %v180 = vpack.c.bf16 %v179, %v179
    %v182 = vlaneseq
    %v183 = vshrl.u32 %v182, 7
    %v184 = vsub.s32 0, %v183
    %v185 = vrot.slane %v105, %v184
    %v203 = vunpack.c.l.b16 %v89
    %v204 = vunpack.c.l.b16 %v90
    %v205 = vunpack.c.l.b16 %v91
    %v206 = vunpack.c.l.b16 %v92
    %v207 = vunpack.c.l.b16 %v93
    %v208 = vunpack.c.l.b16 %v94
    %v209 = vunpack.c.l.b16 %v95
    %v210 = vunpack.c.l.b16 %v96
    %v211 = vunpack.c.l.b16 %v97
    %v212 = vunpack.c.l.b16 %v98
    %v213 = vunpack.c.l.b16 %v99
    %v214 = vunpack.c.l.b16 %v100
    %v215 = vunpack.c.l.b16 %v101
    %v216 = vunpack.c.l.b16 %v102
    %v217 = vunpack.c.l.b16 %v103
    %v218 = vunpack.c.l.b16 %v104
    %v219 = vpack.c.b16 %v204, %v203
    %v220 = vpack.c.b16 %v206, %v205
    %v221 = vpack.c.b16 %v208, %v207
    %v222 = vpack.c.b16 %v210, %v209
    %v223 = vpack.c.b16 %v212, %v211
    %v224 = vpack.c.b16 %v214, %v213
    %v225 = vpack.c.b16 %v216, %v215
    %v226 = vpack.c.b16 %v218, %v217
    %235 = vmatprep.subr.bf16.mxu0 0
    %236 = vmatpush1.bf16.msra.mxu0 %v219
    %237 = vmatprep.subr.bf16.mxu0 0
    %238 = vmatpush1.bf16.msra.mxu0 %v220
    %239 = vmatprep.subr.bf16.mxu0 0
    %240 = vmatpush1.bf16.msra.mxu0 %v221
    %241 = vmatprep.subr.bf16.mxu0 0
    %242 = vmatpush1.bf16.msra.mxu0 %v222
    %243 = vmatprep.subr.bf16.mxu0 0
    %244 = vmatpush1.bf16.msra.mxu0 %v223
    %245 = vmatprep.subr.bf16.mxu0 0
    %246 = vmatpush1.bf16.msra.mxu0 %v224
    %247 = vmatprep.subr.bf16.mxu0 0
    %248 = vmatpush1.bf16.msra.mxu0 %v225
    %249 = vmatprep.subr.bf16.mxu0 0
    %250 = vmatpush1.bf16.msra.mxu0 %v226
    %251 = vmatprep.subr.bf16.mxu0 0
    %252 = vmatpush1.bf16.msra.mxu0 0
    %253 = vmatprep.subr.bf16.mxu0 0
    %254 = vmatpush1.bf16.msra.mxu0 0
    %255 = vmatprep.subr.bf16.mxu0 0
    %256 = vmatpush1.bf16.msra.mxu0 0
    %257 = vmatprep.subr.bf16.mxu0 0
    %258 = vmatpush1.bf16.msra.mxu0 0
    %259 = vmatprep.subr.bf16.mxu0 0
    %260 = vmatpush1.bf16.msra.mxu0 0
    %261 = vmatprep.subr.bf16.mxu0 0
    %262 = vmatpush1.bf16.msra.mxu0 0
    %263 = vmatprep.subr.bf16.mxu0 0
    %264 = vmatpush1.bf16.msra.mxu0 0
    %265 = vmatprep.subr.bf16.mxu0 0
    %266 = vmatpush1.bf16.msra.mxu0 0
    %267 = vmatprep.mubr.bf16.mxu0 0
    %268 = vmatmul.mubr.bf16.gmra.mrb[0].mxu0 %v180
    %v269 = vpop.f32.mrb[0].mxu0
    %v270 = vadd.f32 %v185, %v269
    %v271 = vpop.f32.mrb[0].mxu0
    %v272 = vpop.f32.mrb[0].mxu0
    %v273 = vpop.f32.mrb[0].mxu0
    %274 = vdwg.mxu0
    %v275 = vmax.f32 %v270, 0.0
    %v276 = vpack.c.bf16 %v275, %v275
    %277 = vmatprep.subr.bf16.mxu0 0
    %278 = vmatpush1.bf16.msra.mxu0 %v219
    %279 = vmatprep.subr.bf16.mxu0 0
    %280 = vmatpush1.bf16.msra.mxu0 %v220
    %281 = vmatprep.subr.bf16.mxu0 0
    %282 = vmatpush1.bf16.msra.mxu0 %v221
    %283 = vmatprep.subr.bf16.mxu0 0
    %284 = vmatpush1.bf16.msra.mxu0 %v222
    %285 = vmatprep.subr.bf16.mxu0 0
    %286 = vmatpush1.bf16.msra.mxu0 %v223
    %287 = vmatprep.subr.bf16.mxu0 0
    %288 = vmatpush1.bf16.msra.mxu0 %v224
    %289 = vmatprep.subr.bf16.mxu0 0
    %290 = vmatpush1.bf16.msra.mxu0 %v225
    %291 = vmatprep.subr.bf16.mxu0 0
    %292 = vmatpush1.bf16.msra.mxu0 %v226
    %293 = vmatprep.subr.bf16.mxu0 0
    %294 = vmatpush1.bf16.msra.mxu0 0
    %295 = vmatprep.subr.bf16.mxu0 0
    %296 = vmatpush1.bf16.msra.mxu0 0
    %297 = vmatprep.subr.bf16.mxu0 0
    %298 = vmatpush1.bf16.msra.mxu0 0
    %299 = vmatprep.subr.bf16.mxu0 0
    %300 = vmatpush1.bf16.msra.mxu0 0
    %301 = vmatprep.subr.bf16.mxu0 0
    %302 = vmatpush1.bf16.msra.mxu0 0
    %303 = vmatprep.subr.bf16.mxu0 0
    %304 = vmatpush1.bf16.msra.mxu0 0
    %305 = vmatprep.subr.bf16.mxu0 0
    %306 = vmatpush1.bf16.msra.mxu0 0
    %307 = vmatprep.subr.bf16.mxu0 0
    %308 = vmatpush1.bf16.msra.mxu0 0
    %309 = vmatprep.mubr.bf16.mxu0 0
    %310 = vmatmul.mubr.bf16.gmra.mrb[0].mxu0 %v276
    %v311 = vpop.f32.mrb[0].mxu0
    %v312 = vadd.f32 %v185, %v311
    %v313 = vpop.f32.mrb[0].mxu0
    %v314 = vpop.f32.mrb[0].mxu0
    %v315 = vpop.f32.mrb[0].mxu0
    %316 = vdwg.mxu0
    %v317 = vmax.f32 %v312, 0.0
    %v318 = vpack.c.bf16 %v317, %v317
    %v320 = vlaneseq
    %v321 = vshrl.u32 %v320, 7
    %v322 = vsub.s32 0, %v321
    %v323 = vrot.slane %v122, %v322
    %v341 = vunpack.c.l.b16 %v106
    %v342 = vunpack.c.l.b16 %v107
    %v343 = vunpack.c.l.b16 %v108
    %v344 = vunpack.c.l.b16 %v109
    %v345 = vunpack.c.l.b16 %v110
    %v346 = vunpack.c.l.b16 %v111
    %v347 = vunpack.c.l.b16 %v112
    %v348 = vunpack.c.l.b16 %v113
    %v349 = vunpack.c.l.b16 %v114
    %v350 = vunpack.c.l.b16 %v115
    %v351 = vunpack.c.l.b16 %v116
    %v352 = vunpack.c.l.b16 %v117
    %v353 = vunpack.c.l.b16 %v118
    %v354 = vunpack.c.l.b16 %v119
    %v355 = vunpack.c.l.b16 %v120
    %v356 = vunpack.c.l.b16 %v121
    %v357 = vpack.c.b16 %v342, %v341
    %v358 = vpack.c.b16 %v344, %v343
    %v359 = vpack.c.b16 %v346, %v345
    %v360 = vpack.c.b16 %v348, %v347
    %v361 = vpack.c.b16 %v350, %v349
    %v362 = vpack.c.b16 %v352, %v351
    %v363 = vpack.c.b16 %v354, %v353
    %v364 = vpack.c.b16 %v356, %v355
    %373 = vmatprep.subr.bf16.mxu0 0
    %374 = vmatpush1.bf16.msra.mxu0 %v357
    %375 = vmatprep.subr.bf16.mxu0 0
    %376 = vmatpush1.bf16.msra.mxu0 %v358
    %377 = vmatprep.subr.bf16.mxu0 0
    %378 = vmatpush1.bf16.msra.mxu0 %v359
    %379 = vmatprep.subr.bf16.mxu0 0
    %380 = vmatpush1.bf16.msra.mxu0 %v360
    %381 = vmatprep.subr.bf16.mxu0 0
    %382 = vmatpush1.bf16.msra.mxu0 %v361
    %383 = vmatprep.subr.bf16.mxu0 0
    %384 = vmatpush1.bf16.msra.mxu0 %v362
    %385 = vmatprep.subr.bf16.mxu0 0
    %386 = vmatpush1.bf16.msra.mxu0 %v363
    %387 = vmatprep.subr.bf16.mxu0 0
    %388 = vmatpush1.bf16.msra.mxu0 %v364
    %389 = vmatprep.subr.bf16.mxu0 0
    %390 = vmatpush1.bf16.msra.mxu0 0
    %391 = vmatprep.subr.bf16.mxu0 0
    %392 = vmatpush1.bf16.msra.mxu0 0
    %393 = vmatprep.subr.bf16.mxu0 0
    %394 = vmatpush1.bf16.msra.mxu0 0
    %395 = vmatprep.subr.bf16.mxu0 0
    %396 = vmatpush1.bf16.msra.mxu0 0
    %397 = vmatprep.subr.bf16.mxu0 0
    %398 = vmatpush1.bf16.msra.mxu0 0
    %399 = vmatprep.subr.bf16.mxu0 0
    %400 = vmatpush1.bf16.msra.mxu0 0
    %401 = vmatprep.subr.bf16.mxu0 0
    %402 = vmatpush1.bf16.msra.mxu0 0
    %403 = vmatprep.subr.bf16.mxu0 0
    %404 = vmatpush1.bf16.msra.mxu0 0
    %405 = vmatprep.mubr.bf16.mxu0 0
    %406 = vmatmul.mubr.bf16.gmra.mrb[0].mxu0 %v318
    %v407 = vpop.f32.mrb[0].mxu0
    %v408 = vadd.f32 %v323, %v407
    %v409 = vpop.f32.mrb[0].mxu0
    %v410 = vpop.f32.mrb[0].mxu0
    %v411 = vpop.f32.mrb[0].mxu0
    %412 = vdwg.mxu0
    %v413 = vmax.f32 %v408, 0.0
    %v414 = vpack.c.bf16 %v413, %v413
    %415 = vmatprep.subr.bf16.mxu0 0
    %416 = vmatpush1.bf16.msra.mxu0 %v357
    %417 = vmatprep.subr.bf16.mxu0 0
    %418 = vmatpush1.bf16.msra.mxu0 %v358
    %419 = vmatprep.subr.bf16.mxu0 0
    %420 = vmatpush1.bf16.msra.mxu0 %v359
    %421 = vmatprep.subr.bf16.mxu0 0
    %422 = vmatpush1.bf16.msra.mxu0 %v360
    %423 = vmatprep.subr.bf16.mxu0 0
    %424 = vmatpush1.bf16.msra.mxu0 %v361
    %425 = vmatprep.subr.bf16.mxu0 0
    %426 = vmatpush1.bf16.msra.mxu0 %v362
    %427 = vmatprep.subr.bf16.mxu0 0
    %428 = vmatpush1.bf16.msra.mxu0 %v363
    %429 = vmatprep.subr.bf16.mxu0 0
    %430 = vmatpush1.bf16.msra.mxu0 %v364
    %431 = vmatprep.subr.bf16.mxu0 0
    %432 = vmatpush1.bf16.msra.mxu0 0
    %433 = vmatprep.subr.bf16.mxu0 0
    %434 = vmatpush1.bf16.msra.mxu0 0
    %435 = vmatprep.subr.bf16.mxu0 0
    %436 = vmatpush1.bf16.msra.mxu0 0
    %437 = vmatprep.subr.bf16.mxu0 0
    %438 = vmatpush1.bf16.msra.mxu0 0
    %439 = vmatprep.subr.bf16.mxu0 0
    %440 = vmatpush1.bf16.msra.mxu0 0
    %441 = vmatprep.subr.bf16.mxu0 0
    %442 = vmatpush1.bf16.msra.mxu0 0
    %443 = vmatprep.subr.bf16.mxu0 0
    %444 = vmatpush1.bf16.msra.mxu0 0
    %445 = vmatprep.subr.bf16.mxu0 0
    %446 = vmatpush1.bf16.msra.mxu0 0
    %447 = vmatprep.mubr.bf16.mxu0 0
    %448 = vmatmul.mubr.bf16.gmra.mrb[0].mxu0 %v414
    %v449 = vpop.f32.mrb[0].mxu0
    %v450 = vadd.f32 %v323, %v449
    %v451 = vpop.f32.mrb[0].mxu0
    %v452 = vpop.f32.mrb[0].mxu0
    %v453 = vpop.f32.mrb[0].mxu0
    %454 = vdwg.mxu0
    %v455 = vmax.f32 %v450, 0.0
    %v456 = vpack.c.bf16 %v455, %v455
    %v457 = vld [vmem:[#allocation8] sm:$0xf]
    %v458 = vld [vmem:[#allocation8 + $0x4] sm:$0xf]
    %v459 = vld [vmem:[#allocation8 + $0x8] sm:$0xf]
    %v460 = vld [vmem:[#allocation8 + $0xc] sm:$0xf]
    %v461 = vld [vmem:[#allocation8 + $0x10] sm:$0xf]
    %v462 = vld [vmem:[#allocation8 + $0x14] sm:$0xf]
    %v463 = vld [vmem:[#allocation8 + $0x18] sm:$0xf]
    %v464 = vld [vmem:[#allocation8 + $0x1c] sm:$0xf]
    %v465 = vld [vmem:[#allocation8 + $0x20] sm:$0xf]
    %v466 = vld [vmem:[#allocation8 + $0x24] sm:$0xf]
    %v467 = vld [vmem:[#allocation8 + $0x28] sm:$0xf]
    %v468 = vld [vmem:[#allocation8 + $0x2c] sm:$0xf]
    %v469 = vld [vmem:[#allocation8 + $0x30] sm:$0xf]
    %v470 = vld [vmem:[#allocation8 + $0x34] sm:$0xf]
    %v471 = vld [vmem:[#allocation8 + $0x38] sm:$0xf]
    %v472 = vld [vmem:[#allocation8 + $0x3c] sm:$0xf]
    %v473 = vld [vmem:[%s8] sm:$0x1]
    %v475 = vlaneseq
    %v476 = vshrl.u32 %v475, 7
    %v477 = vsub.s32 0, %v476
    %v478 = vrot.slane %v473, %v477
    %v496 = vunpack.c.l.b16 %v457
    %v497 = vunpack.c.l.b16 %v458
    %v498 = vunpack.c.l.b16 %v459
    %v499 = vunpack.c.l.b16 %v460
    %v500 = vunpack.c.l.b16 %v461
    %v501 = vunpack.c.l.b16 %v462
    %v502 = vunpack.c.l.b16 %v463
    %v503 = vunpack.c.l.b16 %v464
    %v504 = vunpack.c.l.b16 %v465
    %v505 = vunpack.c.l.b16 %v466
    %v506 = vunpack.c.l.b16 %v467
    %v507 = vunpack.c.l.b16 %v468
    %v508 = vunpack.c.l.b16 %v469
    %v509 = vunpack.c.l.b16 %v470
    %v510 = vunpack.c.l.b16 %v471
    %v511 = vunpack.c.l.b16 %v472
    %v512 = vpack.c.b16 %v497, %v496
    %v513 = vpack.c.b16 %v499, %v498
    %v514 = vpack.c.b16 %v501, %v500
    %v515 = vpack.c.b16 %v503, %v502
    %v516 = vpack.c.b16 %v505, %v504
    %v517 = vpack.c.b16 %v507, %v506
    %v518 = vpack.c.b16 %v509, %v508
    %v519 = vpack.c.b16 %v511, %v510
    %528 = vmatprep.subr.bf16.mxu0 0
    %529 = vmatpush1.bf16.msra.mxu0 %v512
    %530 = vmatprep.subr.bf16.mxu0 0
    %531 = vmatpush1.bf16.msra.mxu0 %v513
    %532 = vmatprep.subr.bf16.mxu0 0
    %533 = vmatpush1.bf16.msra.mxu0 %v514
    %534 = vmatprep.subr.bf16.mxu0 0
    %535 = vmatpush1.bf16.msra.mxu0 %v515
    %536 = vmatprep.subr.bf16.mxu0 0
    %537 = vmatpush1.bf16.msra.mxu0 %v516
    %538 = vmatprep.subr.bf16.mxu0 0
    %539 = vmatpush1.bf16.msra.mxu0 %v517
    %540 = vmatprep.subr.bf16.mxu0 0
    %541 = vmatpush1.bf16.msra.mxu0 %v518
    %542 = vmatprep.subr.bf16.mxu0 0
    %543 = vmatpush1.bf16.msra.mxu0 %v519
    %544 = vmatprep.subr.bf16.mxu0 0
    %545 = vmatpush1.bf16.msra.mxu0 0
    %546 = vmatprep.subr.bf16.mxu0 0
    %547 = vmatpush1.bf16.msra.mxu0 0
    %548 = vmatprep.subr.bf16.mxu0 0
    %549 = vmatpush1.bf16.msra.mxu0 0
    %550 = vmatprep.subr.bf16.mxu0 0
    %551 = vmatpush1.bf16.msra.mxu0 0
    %552 = vmatprep.subr.bf16.mxu0 0
    %553 = vmatpush1.bf16.msra.mxu0 0
    %554 = vmatprep.subr.bf16.mxu0 0
    %555 = vmatpush1.bf16.msra.mxu0 0
    %556 = vmatprep.subr.bf16.mxu0 0
    %557 = vmatpush1.bf16.msra.mxu0 0
    %558 = vmatprep.subr.bf16.mxu0 0
    %559 = vmatpush1.bf16.msra.mxu0 0
    %560 = vmatprep.mubr.bf16.mxu0 0
    %561 = vmatmul.mubr.bf16.gmra.mrb[0].mxu0 %v456
    %v562 = vpop.f32.mrb[0].mxu0
    %v563 = vadd.f32 %v478, %v562
    %v564 = vpop.f32.mrb[0].mxu0
    %v565 = vpop.f32.mrb[0].mxu0
    %v566 = vpop.f32.mrb[0].mxu0
    %567 = vdwg.mxu0
    %v568 = vpack.c.bf16 %v563, %v563
    %569 = vst [vmem:[#allocation10] sm:$0x1] %v568
    // Predicated region
    $region54: #{dqn_forward.1} parent=1 // pred_check
      _
    $region55: #{dqn_forward.1} parent=1 // pred_check_branch
      %571 = sbr.rel (0) target = $region57
    $region56: #{dqn_forward.1} parent=1 // pred_region
      %s573 = ssub.s32 16, 16
      %574 = vsyncadd [#allocation4], %s573
      %s576 = sshll.u32 [#allocation10], 4
      %s577 = int_to_ptr.vmem [resolvable:$true] %s576
      %579 = dma.vmem_to_hbm [thread:$0]  %s577, 16, %s9, [#allocation4]
    $region57: #{dqn_forward.1} parent=1 // pred_fallthru
      _
    // Predicated region
    $region58: #{dqn_forward.1} parent=1 // pred_check
      _
    $region59: #{dqn_forward.1} parent=1 // pred_check_branch
      %581 = sbr.rel (0) target = $region61
    $region60: #{dqn_forward.1} parent=1 // pred_region
      %582 = dma.done [#allocation4], 16
    $region61: #{dqn_forward.1} parent=1 // pred_fallthru
      _
    %583 = vsyncpa [#allocation3], 1
    %584 = vsyncpa [#allocation6], 1
    %585 = vsyncpa [#allocation9], 1
    %586 = vsyncpa [#allocation4], 1

</llo_original>
